<compile_context>
chip_gen: v7x
topology: tpu7x:2x2x1
jax: 0.10.0
libtpu: 0.0.40
codegen_flags: <defaults>
</compile_context>

<pallas_src>
import jax
import jax.numpy as jnp
from jax import lax
from jax.experimental import pallas as pl
from jax.experimental.pallas import tpu as pltpu

_LN_EPS = 1e-5                 # torch.nn.LayerNorm default eps
_INV_SQRT2 = 0.7071067811865476


def _erf_f32(x):
    # Abramowitz & Stegun 7.1.26 rational approximation of erf.
    # The divide is offloaded to the EUP via pl.reciprocal(approx=True); the
    # added error (~1e-3 relative on t) is negligible for GELU and well inside
    # the bf16-matmul noise floor of this kernel.
    a1, a2, a3, a4, a5 = (0.254829592, -0.284496736, 1.421413741,
                          -1.453152027, 1.061405429)
    p = 0.3275911
    z = jnp.abs(x)
    t = pl.reciprocal(1.0 + p * z, approx=True)        # EUP, not VALU divide
    poly = ((((a5 * t + a4) * t + a3) * t + a2) * t + a1) * t
    e = 1.0 - poly * jnp.exp(-z * z)                    # exp on EUP
    return jnp.where(x >= 0.0, e, -e)                   # single vsel


def _gelu_exact(x):
    # Matches torch.nn.GELU() default (erf-based).
    return 0.5 * x * (1.0 + _erf_f32(x * _INV_SQRT2))


def _ffn_kernel(x_ref, gamma_ref, beta_ref, w1_ref, b1_ref, w2_ref, b2_ref,
                o_ref):
    # x_ref: (tm, dim).  Weights are bf16, resident in VMEM (constant index_map,
    # single-buffered) and consumed in their storage dtype — no per-step casts.
    x = x_ref[...].astype(jnp.float32)

    # --- LayerNorm over the feature axis (f32) ---
    mean = jnp.mean(x, axis=-1, keepdims=True)
    xc = x - mean
    var = jnp.mean(xc * xc, axis=-1, keepdims=True)
    h = xc * lax.rsqrt(var + _LN_EPS)
    h = h * gamma_ref[...] + beta_ref[...]              # gamma/beta already f32

    # --- Linear(dim -> hidden): bf16 MXU inputs, f32 accumulation ---
    h = jnp.dot(h.astype(w1_ref.dtype), w1_ref[...],
                preferred_element_type=jnp.float32)
    h = h + b1_ref[...]

    # --- Exact (erf) GELU ---
    h = _gelu_exact(h)

    # --- Linear(hidden -> dim): bf16 MXU inputs, f32 accumulation ---
    out = jnp.dot(h.astype(w2_ref.dtype), w2_ref[...],
                  preferred_element_type=jnp.float32)
    out = out + b2_ref[...]

    o_ref[...] = out.astype(o_ref.dtype)


def feed_forward(x, gamma, beta, w1, b1, w2, b2, *, block_rows=256):
    """y = Linear2(GELU(Linear1(LayerNorm(x)))); dropout(p=0) is identity.

    x: (..., dim);  gamma/beta: (dim,)
    w1: (dim, hidden)  (= torch Linear1.weight.T),  b1: (hidden,)
    w2: (hidden, dim)  (= torch Linear2.weight.T),  b2: (dim,)
    """
    orig_shape = x.shape
    dim = orig_shape[-1]
    hidden = w1.shape[1]
    assert w1.shape == (dim, hidden) and w2.shape == (hidden, dim)
    assert gamma.shape == (dim,) and beta.shape == (dim,)
    assert b1.shape == (hidden,) and b2.shape == (dim,)

    x2 = x.reshape(-1, dim)
    m = x2.shape[0]

    # Row tile: multiple of 8 (sublane); default 256 to fill the 256-wide MXU
    # on v6e/v7x and amortize per-grid-step overhead; capped by padded rows.
    tm = min(block_rows, max(8, -(-m // 8) * 8))
    m_pad = -(-m // tm) * tm
    if m_pad != m:
        x2 = jnp.pad(x2, ((0, m_pad - m), (0, 0)))

    # bf16 weight residency (half the VMEM, native MXU dtype); small params
    # pre-cast to f32 so the LN / bias adds need no per-step casts.
    w1b = w1.astype(jnp.bfloat16)
    w2b = w2.astype(jnp.bfloat16)
    gamma2 = gamma.reshape(1, dim).astype(jnp.float32)
    beta2 = beta.reshape(1, dim).astype(jnp.float32)
    b1_2 = b1.reshape(1, hidden).astype(jnp.float32)
    b2_2 = b2.reshape(1, dim).astype(jnp.float32)

    const = lambda i: (0, 0)
    resident = dict(pipeline_mode=pl.Buffered(1))   # single-buffer constants

    # Explicit VMEM budget: single-buffered bf16 weights + f32 small params +
    # double-buffered in/out row tiles + f32 GELU/matmul intermediates.
    x_bytes = x2.dtype.itemsize
    out_bytes = jnp.dtype(x.dtype).itemsize
    w_bytes = 2  # bf16
    vmem_need = (
        2 * dim * hidden * w_bytes          # W1 + W2, single-buffered
        + (3 * dim + hidden) * 4            # gamma, beta, b1, b2 (f32)
        + 2 * tm * dim * x_bytes            # x tile, double-buffered
        + 2 * tm * dim * out_bytes          # out tile, double-buffered
        + 4 * tm * hidden * 4               # f32 intermediates / GELU temps
    )
    vmem_limit = int(min(max(2 * vmem_need, 16 * 1024 * 1024),
                         64 * 1024 * 1024))  # <= v7x physical VMEM per TC

    cost = pl.CostEstimate(
        flops=4 * m_pad * dim * hidden + 12 * m_pad * (dim + hidden),
        transcendentals=2 * m_pad * hidden,   # exp + approx-recip per GELU elt
        bytes_accessed=(m_pad * dim * (x_bytes + out_bytes)
                        + 2 * dim * hidden * w_bytes + (3 * dim + hidden) * 4),
    )

    out = pl.pallas_call(
        _ffn_kernel,
        out_shape=jax.ShapeDtypeStruct((m_pad, dim), x.dtype),
        grid=(m_pad // tm,),
        in_specs=[
            pl.BlockSpec((tm, dim), lambda i: (i, 0)),        # x row tile
            pl.BlockSpec((1, dim), const, **resident),        # gamma
            pl.BlockSpec((1, dim), const, **resident),        # beta
            pl.BlockSpec((dim, hidden), const, **resident),   # W1 (resident)
            pl.BlockSpec((1, hidden), const, **resident),     # b1
            pl.BlockSpec((hidden, dim), const, **resident),   # W2 (resident)
            pl.BlockSpec((1, dim), const, **resident),        # b2
        ],
        out_specs=pl.BlockSpec((tm, dim), lambda i: (i, 0)),
        compiler_params=pltpu.CompilerParams(
            dimension_semantics=("parallel",),                # v7x: 2 TCs split rows
            vmem_limit_bytes=vmem_limit),
        cost_estimate=cost,
    )(x2, gamma2, beta2, w1b, b1_2, w2b, b2_2)

    if m_pad != m:
        out = out[:m]
    return out.reshape(orig_shape)


if __name__ == "__main__":
    key = jax.random.PRNGKey(0)
    kx, kg, kb, kw1, kb1, kw2, kb2 = jax.random.split(key, 7)

    # Small ViT-ish FFN shapes, lane-dense (dim/hidden multiples of 128).
    B, N, dim, hidden = 2, 8, 128, 256

    x = jax.random.normal(kx, (B, N, dim), dtype=jnp.float32)
    gamma = 1.0 + 0.1 * jax.random.normal(kg, (dim,), dtype=jnp.float32)
    beta = 0.1 * jax.random.normal(kb, (dim,), dtype=jnp.float32)
    w1 = jax.random.normal(kw1, (dim, hidden), dtype=jnp.float32) / jnp.sqrt(dim)
    b1 = 0.1 * jax.random.normal(kb1, (hidden,), dtype=jnp.float32)
    w2 = jax.random.normal(kw2, (hidden, dim), dtype=jnp.float32) / jnp.sqrt(hidden)
    b2 = 0.1 * jax.random.normal(kb2, (dim,), dtype=jnp.float32)

    y = feed_forward(x, gamma, beta, w1, b1, w2, b2)
    jax.block_until_ready(y)

    # Pure-JAX f32 reference (exact erf GELU, same as torch.nn.GELU default).
    def ref(xx):
        mu = jnp.mean(xx, -1, keepdims=True)
        var = jnp.mean((xx - mu) ** 2, -1, keepdims=True)
        h = (xx - mu) / jnp.sqrt(var + _LN_EPS) * gamma + beta
        h = jax.nn.gelu(h @ w1 + b1, approximate=False)
        return h @ w2 + b2

    y_ref = ref(x)
    assert y.shape == (B, N, dim)
    # Tolerance accounts for the intentional bf16 MXU path (weights + matmul
    # inputs in bf16, f32 accumulation) vs. the full-f32 reference.
    assert jnp.allclose(y, y_ref, atol=2e-2, rtol=2e-2), float(
        jnp.max(jnp.abs(y - y_ref)))
    print("KERNEL_OK")
</pallas_src>

<mosaic_0001>
module attributes {stable_mosaic.version = 11 : i64} {
  func.func @_ffn_kernel(%arg0: i32, %arg1: memref<16x128xf32, #tpu.memory_space<vmem>>, %arg2: memref<1x128xf32, #tpu.memory_space<vmem>>, %arg3: memref<1x128xf32, #tpu.memory_space<vmem>>, %arg4: memref<128x256xbf16, #tpu.memory_space<vmem>>, %arg5: memref<1x256xf32, #tpu.memory_space<vmem>>, %arg6: memref<256x128xbf16, #tpu.memory_space<vmem>>, %arg7: memref<1x128xf32, #tpu.memory_space<vmem>>, %arg8: memref<16x128xf32, #tpu.memory_space<vmem>>) attributes {dimension_semantics = [#tpu.dimension_semantics<parallel>], iteration_bounds = array<i64: 1>, scalar_prefetch = 0 : i64, scratch_operands = 0 : i64, tpu.core_type = #tpu.core_type<tc>, window_params = [{transform_indices = @transform_0, window_bounds = array<i64: 16, 128>}, {pipeline_mode = #tpu.pipeline_mode<synchronous>, transform_indices = @transform_1, window_bounds = array<i64: 1, 128>}, {pipeline_mode = #tpu.pipeline_mode<synchronous>, transform_indices = @transform_2, window_bounds = array<i64: 1, 128>}, {pipeline_mode = #tpu.pipeline_mode<synchronous>, transform_indices = @transform_3, window_bounds = array<i64: 128, 256>}, {pipeline_mode = #tpu.pipeline_mode<synchronous>, transform_indices = @transform_4, window_bounds = array<i64: 1, 256>}, {pipeline_mode = #tpu.pipeline_mode<synchronous>, transform_indices = @transform_5, window_bounds = array<i64: 256, 128>}, {pipeline_mode = #tpu.pipeline_mode<synchronous>, transform_indices = @transform_6, window_bounds = array<i64: 1, 128>}, {transform_indices = @transform_7, window_bounds = array<i64: 16, 128>}]} {
    %c0 = arith.constant 0 : index
    %c0_0 = arith.constant 0 : index
    %0 = vector.load %arg1[%c0, %c0_0] : memref<16x128xf32, #tpu.memory_space<vmem>>, vector<16x128xf32>
    %cst = arith.constant dense<0.000000e+00> : vector<16xf32>
    %1 = vector.multi_reduction <add>, %0, %cst [1] : vector<16x128xf32> to vector<16xf32>
    %2 = vector.shape_cast %1 : vector<16xf32> to vector<16x1xf32>
    %cst_1 = arith.constant 1.280000e+02 : f32
    %3 = vector.broadcast %cst_1 : f32 to vector<16x1xf32>
    %4 = arith.divf %2, %3 : vector<16x1xf32>
    %5 = vector.broadcast %4 : vector<16x1xf32> to vector<16x128xf32>
    %6 = arith.subf %0, %5 : vector<16x128xf32>
    %7 = arith.mulf %6, %6 : vector<16x128xf32>
    %cst_2 = arith.constant dense<0.000000e+00> : vector<16xf32>
    %8 = vector.multi_reduction <add>, %7, %cst_2 [1] : vector<16x128xf32> to vector<16xf32>
    %9 = vector.shape_cast %8 : vector<16xf32> to vector<16x1xf32>
    %cst_3 = arith.constant 1.280000e+02 : f32
    %10 = vector.broadcast %cst_3 : f32 to vector<16x1xf32>
    %11 = arith.divf %9, %10 : vector<16x1xf32>
    %cst_4 = arith.constant 9.99999974E-6 : f32
    %12 = vector.broadcast %cst_4 : f32 to vector<16x1xf32>
    %13 = arith.addf %11, %12 : vector<16x1xf32>
    %14 = math.rsqrt %13 : vector<16x1xf32>
    %15 = vector.broadcast %14 : vector<16x1xf32> to vector<16x128xf32>
    %16 = arith.mulf %6, %15 : vector<16x128xf32>
    %c0_5 = arith.constant 0 : index
    %c0_6 = arith.constant 0 : index
    %17 = vector.load %arg2[%c0_5, %c0_6] : memref<1x128xf32, #tpu.memory_space<vmem>>, vector<1x128xf32>
    %18 = vector.broadcast %17 : vector<1x128xf32> to vector<16x128xf32>
    %19 = arith.mulf %16, %18 : vector<16x128xf32>
    %c0_7 = arith.constant 0 : index
    %c0_8 = arith.constant 0 : index
    %20 = vector.load %arg3[%c0_7, %c0_8] : memref<1x128xf32, #tpu.memory_space<vmem>>, vector<1x128xf32>
    %21 = vector.broadcast %20 : vector<1x128xf32> to vector<16x128xf32>
    %22 = arith.addf %19, %21 : vector<16x128xf32>
    %23 = arith.truncf %22 : vector<16x128xf32> to vector<16x128xbf16>
    %c0_9 = arith.constant 0 : index
    %c0_10 = arith.constant 0 : index
    %24 = vector.load %arg4[%c0_9, %c0_10] : memref<128x256xbf16, #tpu.memory_space<vmem>>, vector<128x256xbf16>
    %cst_11 = arith.constant dense<0.000000e+00> : vector<16x256xf32>
    %25 = tpu.matmul %23, %24, %cst_11 {dimension_numbers = #tpu.dot_dimension_numbers<[1], [0], [0], [1], [0, 0, 1, 1], [], []>} : vector<16x128xbf16>, vector<128x256xbf16>, vector<16x256xf32> -> vector<16x256xf32>
    %c0_12 = arith.constant 0 : index
    %c0_13 = arith.constant 0 : index
    %26 = vector.load %arg5[%c0_12, %c0_13] : memref<1x256xf32, #tpu.memory_space<vmem>>, vector<1x256xf32>
    %27 = vector.broadcast %26 : vector<1x256xf32> to vector<16x256xf32>
    %28 = arith.addf %25, %27 : vector<16x256xf32>
    %cst_14 = arith.constant 5.000000e-01 : f32
    %29 = vector.broadcast %cst_14 : f32 to vector<16x256xf32>
    %30 = arith.mulf %29, %28 : vector<16x256xf32>
    %cst_15 = arith.constant 0.707106769 : f32
    %31 = vector.broadcast %cst_15 : f32 to vector<16x256xf32>
    %32 = arith.mulf %28, %31 : vector<16x256xf32>
    %33 = math.absf %32 : vector<16x256xf32>
    %cst_16 = arith.constant 0.327591091 : f32
    %34 = vector.broadcast %cst_16 : f32 to vector<16x256xf32>
    %35 = arith.mulf %34, %33 : vector<16x256xf32>
    %cst_17 = arith.constant 1.000000e+00 : f32
    %36 = vector.broadcast %cst_17 : f32 to vector<16x256xf32>
    %37 = arith.addf %36, %35 : vector<16x256xf32>
    %38 = tpu.reciprocal %37 {approx = true} : vector<16x256xf32> -> vector<16x256xf32>
    %cst_18 = arith.constant 1.06140542 : f32
    %39 = vector.broadcast %cst_18 : f32 to vector<16x256xf32>
    %40 = arith.mulf %39, %38 : vector<16x256xf32>
    %cst_19 = arith.constant -1.45315206 : f32
    %41 = vector.broadcast %cst_19 : f32 to vector<16x256xf32>
    %42 = arith.addf %40, %41 : vector<16x256xf32>
    %43 = arith.mulf %42, %38 : vector<16x256xf32>
    %cst_20 = arith.constant 1.42141378 : f32
    %44 = vector.broadcast %cst_20 : f32 to vector<16x256xf32>
    %45 = arith.addf %43, %44 : vector<16x256xf32>
    %46 = arith.mulf %45, %38 : vector<16x256xf32>
    %cst_21 = arith.constant -0.284496725 : f32
    %47 = vector.broadcast %cst_21 : f32 to vector<16x256xf32>
    %48 = arith.addf %46, %47 : vector<16x256xf32>
    %49 = arith.mulf %48, %38 : vector<16x256xf32>
    %cst_22 = arith.constant 0.254829586 : f32
    %50 = vector.broadcast %cst_22 : f32 to vector<16x256xf32>
    %51 = arith.addf %49, %50 : vector<16x256xf32>
    %52 = arith.mulf %51, %38 : vector<16x256xf32>
    %cst_23 = arith.constant 0.000000e+00 : f32
    %53 = vector.broadcast %cst_23 : f32 to vector<16x256xf32>
    %54 = arith.subf %53, %33 : vector<16x256xf32>
    %55 = arith.mulf %54, %33 : vector<16x256xf32>
    %56 = math.exp %55 : vector<16x256xf32>
    %57 = arith.mulf %52, %56 : vector<16x256xf32>
    %cst_24 = arith.constant 1.000000e+00 : f32
    %58 = vector.broadcast %cst_24 : f32 to vector<16x256xf32>
    %59 = arith.subf %58, %57 : vector<16x256xf32>
    %cst_25 = arith.constant 0.000000e+00 : f32
    %60 = vector.broadcast %cst_25 : f32 to vector<16x256xf32>
    %61 = arith.cmpf oge, %32, %60 : vector<16x256xf32>
    %cst_26 = arith.constant 0.000000e+00 : f32
    %62 = vector.broadcast %cst_26 : f32 to vector<16x256xf32>
    %63 = arith.subf %62, %59 : vector<16x256xf32>
    %64 = arith.select %61, %59, %63 : vector<16x256xi1>, vector<16x256xf32>
    %cst_27 = arith.constant 1.000000e+00 : f32
    %65 = vector.broadcast %cst_27 : f32 to vector<16x256xf32>
    %66 = arith.addf %65, %64 : vector<16x256xf32>
    %67 = arith.mulf %30, %66 : vector<16x256xf32>
    %68 = arith.truncf %67 : vector<16x256xf32> to vector<16x256xbf16>
    %c0_28 = arith.constant 0 : index
    %c0_29 = arith.constant 0 : index
    %69 = vector.load %arg6[%c0_28, %c0_29] : memref<256x128xbf16, #tpu.memory_space<vmem>>, vector<256x128xbf16>
    %cst_30 = arith.constant dense<0.000000e+00> : vector<16x128xf32>
    %70 = tpu.matmul %68, %69, %cst_30 {dimension_numbers = #tpu.dot_dimension_numbers<[1], [0], [0], [1], [0, 0, 1, 1], [], []>} : vector<16x256xbf16>, vector<256x128xbf16>, vector<16x128xf32> -> vector<16x128xf32>
    %c0_31 = arith.constant 0 : index
    %c0_32 = arith.constant 0 : index
    %71 = vector.load %arg7[%c0_31, %c0_32] : memref<1x128xf32, #tpu.memory_space<vmem>>, vector<1x128xf32>
    %72 = vector.broadcast %71 : vector<1x128xf32> to vector<16x128xf32>
    %73 = arith.addf %70, %72 : vector<16x128xf32>
    %c0_33 = arith.constant 0 : index
    %c0_34 = arith.constant 0 : index
    %74 = vector.load %arg8[%c0_33, %c0_34] : memref<16x128xf32, #tpu.memory_space<vmem>>, vector<16x128xf32>
    tpu.vector_store %arg8[%c0_33, %c0_34], %73 {strides = array<i32>} : memref<16x128xf32, #tpu.memory_space<vmem>>, vector<16x128xf32>,
    return
  }
  func.func @transform_0(%arg0: i32) -> (i32, i32) {
    %c0_i32 = arith.constant 0 : i32
    %c0_i32_0 = arith.constant 0 : i32
    return %arg0, %c0_i32 : i32, i32
  }
  func.func @transform_1(%arg0: i32) -> (i32, i32) {
    %c0_i32 = arith.constant 0 : i32
    %c0_i32_0 = arith.constant 0 : i32
    %c0_i32_1 = arith.constant 0 : i32
    return %c0_i32, %c0_i32_0 : i32, i32
  }
  func.func @transform_2(%arg0: i32) -> (i32, i32) {
    %c0_i32 = arith.constant 0 : i32
    %c0_i32_0 = arith.constant 0 : i32
    %c0_i32_1 = arith.constant 0 : i32
    return %c0_i32, %c0_i32_0 : i32, i32
  }
  func.func @transform_3(%arg0: i32) -> (i32, i32) {
    %c0_i32 = arith.constant 0 : i32
    %c0_i32_0 = arith.constant 0 : i32
    %c0_i32_1 = arith.constant 0 : i32
    return %c0_i32, %c0_i32_0 : i32, i32
  }
  func.func @transform_4(%arg0: i32) -> (i32, i32) {
    %c0_i32 = arith.constant 0 : i32
    %c0_i32_0 = arith.constant 0 : i32
    %c0_i32_1 = arith.constant 0 : i32
    return %c0_i32, %c0_i32_0 : i32, i32
  }
  func.func @transform_5(%arg0: i32) -> (i32, i32) {
    %c0_i32 = arith.constant 0 : i32
    %c0_i32_0 = arith.constant 0 : i32
    %c0_i32_1 = arith.constant 0 : i32
    return %c0_i32, %c0_i32_0 : i32, i32
  }
  func.func @transform_6(%arg0: i32) -> (i32, i32) {
    %c0_i32 = arith.constant 0 : i32
    %c0_i32_0 = arith.constant 0 : i32
    %c0_i32_1 = arith.constant 0 : i32
    return %c0_i32, %c0_i32_0 : i32, i32
  }
  func.func @transform_7(%arg0: i32) -> (i32, i32) {
    %c0_i32 = arith.constant 0 : i32
    %c0_i32_0 = arith.constant 0 : i32
    return %arg0, %c0_i32 : i32, i32
  }
}

</mosaic_0001>

<llo_original>
// kernel: tpu_custom_call.1
$region0: #{tpu_custom_call.1}
  #allocation0 [shape = 'u32[]', space=smem, size = 0x4, offset = 0x4, fixed_abs, tag = 'smem constant byte address 0x4 - core index']
  #allocation1 [shape = 'u32[144,128]{1,0:T(1,128)}', space=vmem, size = 0x12000, scoped, tag = 'internal scratch']
  %s0 = inlined_call_operand.hbm [shape: f32[16,128], index: 0, kind: input, shape index: {}]
  %s1 = inlined_call_operand.vmem [shape: f32[1,128], index: 1, kind: input, shape index: {}]
  %s2 = inlined_call_operand.vmem [shape: f32[1,128], index: 2, kind: input, shape index: {}]
  %s3 = inlined_call_operand.hbm [shape: bf16[128,256], index: 3, kind: input, shape index: {}]
  %s4 = inlined_call_operand.vmem [shape: f32[1,256], index: 4, kind: input, shape index: {}]
  %s5 = inlined_call_operand.hbm [shape: bf16[256,128], index: 5, kind: input, shape index: {}]
  %s6 = inlined_call_operand.vmem [shape: f32[1,128], index: 6, kind: input, shape index: {}]
  %s7 = inlined_call_operand.hbm [shape: f32[16,128], index: 7, kind: output, shape index: {}]
  %s8 = sld [smem:[#allocation0]]
  $region50: #{tpu_custom_call.1} parent=0
    _
  %s10 = ssub.s32 1, %s8
  %s11 = scalar_select 0, %s10, %s8
  $region1: #{tpu_custom_call.1} parent=0
    #allocation2 [shape = 'u8[8192]{0}', space=vmem, size = 0x2000, scoped, tag = 'input window, operand 0, single buffered']
    #allocation3 [shape = 's32[1]{0}', space=sflag, size = 0x4, scoped, tag = 'scoped memory for tpu_custom_call.1']
    #allocation4 [shape = 's32[1]{0}', space=sflag, size = 0x4, scoped, tag = 'scoped memory for tpu_custom_call.1']
    #allocation5 [shape = 'u8[65536]{0}', space=vmem, size = 0x10000, scoped, tag = 'input window, operand 3, single buffered']
    #allocation6 [shape = 's32[1]{0}', space=sflag, size = 0x4, scoped, tag = 'scoped memory for tpu_custom_call.1']
    #allocation7 [shape = 'u8[65536]{0}', space=vmem, size = 0x10000, scoped, tag = 'input window, operand 5, single buffered']
    #allocation8 [shape = 'u8[8192]{0}', space=vmem, size = 0x2000, scoped, tag = 'output window, operand 0, single buffered']
    %12 = vsyncpa [#allocation3], 0
    %13 = vsyncpa [#allocation6], 0
    %14 = vsyncpa [#allocation4], 0
    // Predicated region
    $region2: #{tpu_custom_call.1} parent=1 // pred_check
      _
    $region3: #{tpu_custom_call.1} parent=1 // pred_check_branch
      %16 = sbr.rel (0) target = $region5
    $region4: #{tpu_custom_call.1} parent=1 // pred_region
      %s18 = ssub.s32 256, 256
      %19 = vsyncadd [#allocation3], %s18
      %s20 = sshll.u32 [#allocation2], 4
      %s21 = int_to_ptr.vmem [resolvable:$true] %s20
      %26 = dma.hbm_to_vmem [thread:$0]  %s0, 256, %s21, [#allocation3], 128, 128, 8
    $region5: #{tpu_custom_call.1} parent=1 // pred_fallthru
      _
    // Predicated region
    $region6: #{tpu_custom_call.1} parent=1 // pred_check
      _
    $region7: #{tpu_custom_call.1} parent=1 // pred_check_branch
      %28 = sbr.rel (0) target = $region9
    $region8: #{tpu_custom_call.1} parent=1 // pred_region
      _
    $region9: #{tpu_custom_call.1} parent=1 // pred_fallthru
      _
    // Predicated region
    $region10: #{tpu_custom_call.1} parent=1 // pred_check
      _
    $region11: #{tpu_custom_call.1} parent=1 // pred_check_branch
      %30 = sbr.rel (0) target = $region13
    $region12: #{tpu_custom_call.1} parent=1 // pred_region
      _
    $region13: #{tpu_custom_call.1} parent=1 // pred_fallthru
      _
    // Predicated region
    $region14: #{tpu_custom_call.1} parent=1 // pred_check
      _
    $region15: #{tpu_custom_call.1} parent=1 // pred_check_branch
      %32 = sbr.rel (0) target = $region17
    $region16: #{tpu_custom_call.1} parent=1 // pred_region
      %s34 = ssub.s32 2048, 2048
      %35 = vsyncadd [#allocation6], %s34
      %s36 = sshll.u32 [#allocation5], 4
      %s37 = int_to_ptr.vmem [resolvable:$true] %s36
      %42 = dma.hbm_to_vmem [thread:$0]  %s3, 2048, %s37, [#allocation6], 128, 128, 8
    $region17: #{tpu_custom_call.1} parent=1 // pred_fallthru
      _
    // Predicated region
    $region18: #{tpu_custom_call.1} parent=1 // pred_check
      _
    $region19: #{tpu_custom_call.1} parent=1 // pred_check_branch
      %44 = sbr.rel (0) target = $region21
    $region20: #{tpu_custom_call.1} parent=1 // pred_region
      _
    $region21: #{tpu_custom_call.1} parent=1 // pred_fallthru
      _
    // Predicated region
    $region22: #{tpu_custom_call.1} parent=1 // pred_check
      _
    $region23: #{tpu_custom_call.1} parent=1 // pred_check_branch
      %46 = sbr.rel (0) target = $region25
    $region24: #{tpu_custom_call.1} parent=1 // pred_region
      %s48 = ssub.s32 2048, 2048
      %49 = vsyncadd [#allocation6], %s48
      %s50 = sshll.u32 [#allocation7], 4
      %s51 = int_to_ptr.vmem [resolvable:$true] %s50
      %56 = dma.hbm_to_vmem [thread:$0]  %s5, 2048, %s51, [#allocation6], 64, 64, 4
    $region25: #{tpu_custom_call.1} parent=1 // pred_fallthru
      _
    // Predicated region
    $region26: #{tpu_custom_call.1} parent=1 // pred_check
      _
    $region27: #{tpu_custom_call.1} parent=1 // pred_check_branch
      %58 = sbr.rel (0) target = $region29
    $region28: #{tpu_custom_call.1} parent=1 // pred_region
      _
    $region29: #{tpu_custom_call.1} parent=1 // pred_fallthru
      _
    // Predicated region
    $region30: #{tpu_custom_call.1} parent=1 // pred_check
      _
    $region31: #{tpu_custom_call.1} parent=1 // pred_check_branch
      %60 = sbr.rel (0) target = $region33
    $region32: #{tpu_custom_call.1} parent=1 // pred_region
      %61 = dma.done [#allocation3], 256
    $region33: #{tpu_custom_call.1} parent=1 // pred_fallthru
      _
    // Predicated region
    $region34: #{tpu_custom_call.1} parent=1 // pred_check
      _
    $region35: #{tpu_custom_call.1} parent=1 // pred_check_branch
      %63 = sbr.rel (0) target = $region37
    $region36: #{tpu_custom_call.1} parent=1 // pred_region
      %64 = dma.done [#allocation6], 2048
    $region37: #{tpu_custom_call.1} parent=1 // pred_fallthru
      _
    // Predicated region
    $region38: #{tpu_custom_call.1} parent=1 // pred_check
      _
    $region39: #{tpu_custom_call.1} parent=1 // pred_check_branch
      %66 = sbr.rel (0) target = $region41
    $region40: #{tpu_custom_call.1} parent=1 // pred_region
      %67 = dma.done [#allocation6], 2048
    $region41: #{tpu_custom_call.1} parent=1 // pred_fallthru
      _
    %v69 = vld [vmem:[#allocation2] sm:$0xff]
    %v70 = vld [vmem:[#allocation2 + $0x8] sm:$0xff]
    %71 = vadd.xlane.f32.xlu0 %v69
    %v72 = vpop.xlane.xlu0 %71
    %73 = vadd.xlane.f32.xlu0 %v70
    %v74 = vpop.xlane.xlu0 %73
    %v75 = vrcp.pop 128.0
    %v76 = vmul.f32 %v72, %v75
    %v77 = vmul.f32 %v74, %v75
    %v78 = vsub.f32 %v69, %v76
    %v79 = vsub.f32 %v70, %v77
    %v80 = vmul.f32 %v78, %v78
    %v81 = vmul.f32 %v79, %v79
    %82 = vadd.xlane.f32.xlu0 %v80
    %v83 = vpop.xlane.xlu0 %82
    %84 = vadd.xlane.f32.xlu0 %v81
    %v85 = vpop.xlane.xlu0 %84
    %v86 = vmul.f32 %v83, %v75
    %v87 = vmul.f32 %v85, %v75
    %v88 = vadd.f32 %v86, 1e-05
    %v89 = vadd.f32 %v87, 1e-05
    %v90 = vrsqrt.pop %v88
    %v91 = vrsqrt.pop %v89
    %v92 = vmul.f32 %v78, %v90
    %v93 = vmul.f32 %v79, %v91
    %v94 = vld [vmem:[%s1] sm:$0x1]
    %v96 = vlaneseq
    %v97 = vshrl.u32 %v96, 7
    %v98 = vsub.s32 0, %v97
    %v99 = vrot.slane %v94, %v98
    %v101 = vmul.f32 %v92, %v99
    %v102 = vmul.f32 %v93, %v99
    %v103 = vld [vmem:[%s2] sm:$0x1]
    %v105 = vlaneseq
    %v106 = vshrl.u32 %v105, 7
    %v107 = vsub.s32 0, %v106
    %v108 = vrot.slane %v103, %v107
    %v110 = vadd.f32 %v101, %v108
    %v111 = vadd.f32 %v102, %v108
    %v112 = vpack.c.bf16 %v111, %v110
    %v113 = vld [vmem:[#allocation5] sm:$0xff]
    %v114 = vld [vmem:[#allocation5 + $0x8] sm:$0xff]
    %v115 = vld [vmem:[#allocation5 + $0x10] sm:$0xff]
    %v116 = vld [vmem:[#allocation5 + $0x18] sm:$0xff]
    %v117 = vld [vmem:[#allocation5 + $0x20] sm:$0xff]
    %v118 = vld [vmem:[#allocation5 + $0x28] sm:$0xff]
    %v119 = vld [vmem:[#allocation5 + $0x30] sm:$0xff]
    %v120 = vld [vmem:[#allocation5 + $0x38] sm:$0xff]
    %v121 = vld [vmem:[#allocation5 + $0x40] sm:$0xff]
    %v122 = vld [vmem:[#allocation5 + $0x48] sm:$0xff]
    %v123 = vld [vmem:[#allocation5 + $0x50] sm:$0xff]
    %v124 = vld [vmem:[#allocation5 + $0x58] sm:$0xff]
    %v125 = vld [vmem:[#allocation5 + $0x60] sm:$0xff]
    %v126 = vld [vmem:[#allocation5 + $0x68] sm:$0xff]
    %v127 = vld [vmem:[#allocation5 + $0x70] sm:$0xff]
    %v128 = vld [vmem:[#allocation5 + $0x78] sm:$0xff]
    %v129 = vld [vmem:[%s4] sm:$0x3]
    %v131 = vlaneseq
    %v132 = vshrl.u32 %v131, 7
    %v133 = vsub.s32 0, %v132
    %v134 = vrot.slane %v129, %v133
    %v135 = vlaneseq
    %v136 = vshrl.u32 %v135, 7
    %v137 = vsub.s32 1, %v136
    %v138 = vrot.slane %v129, %v137
    %v157 = vunpack.c.l.b16 %v113
    %v158 = vunpack.c.h.b16 %v113
    %v159 = vunpack.c.l.b16 %v114
    %v160 = vunpack.c.h.b16 %v114
    %v161 = vunpack.c.l.b16 %v115
    %v162 = vunpack.c.h.b16 %v115
    %v163 = vunpack.c.l.b16 %v116
    %v164 = vunpack.c.h.b16 %v116
    %v165 = vunpack.c.l.b16 %v117
    %v166 = vunpack.c.h.b16 %v117
    %v167 = vunpack.c.l.b16 %v118
    %v168 = vunpack.c.h.b16 %v118
    %v169 = vunpack.c.l.b16 %v119
    %v170 = vunpack.c.h.b16 %v119
    %v171 = vunpack.c.l.b16 %v120
    %v172 = vunpack.c.h.b16 %v120
    %v173 = vunpack.c.l.b16 %v121
    %v174 = vunpack.c.h.b16 %v121
    %v175 = vunpack.c.l.b16 %v122
    %v176 = vunpack.c.h.b16 %v122
    %v177 = vunpack.c.l.b16 %v123
    %v178 = vunpack.c.h.b16 %v123
    %v179 = vunpack.c.l.b16 %v124
    %v180 = vunpack.c.h.b16 %v124
    %v181 = vunpack.c.l.b16 %v125
    %v182 = vunpack.c.h.b16 %v125
    %v183 = vunpack.c.l.b16 %v126
    %v184 = vunpack.c.h.b16 %v126
    %v185 = vunpack.c.l.b16 %v127
    %v186 = vunpack.c.h.b16 %v127
    %v187 = vunpack.c.l.b16 %v128
    %v188 = vunpack.c.h.b16 %v128
    %v189 = vpack.c.b16 %v159, %v157
    %v190 = vpack.c.b16 %v160, %v158
    %v191 = vpack.c.b16 %v163, %v161
    %v192 = vpack.c.b16 %v164, %v162
    %v193 = vpack.c.b16 %v167, %v165
    %v194 = vpack.c.b16 %v168, %v166
    %v195 = vpack.c.b16 %v171, %v169
    %v196 = vpack.c.b16 %v172, %v170
    %v197 = vpack.c.b16 %v175, %v173
    %v198 = vpack.c.b16 %v176, %v174
    %v199 = vpack.c.b16 %v179, %v177
    %v200 = vpack.c.b16 %v180, %v178
    %v201 = vpack.c.b16 %v183, %v181
    %v202 = vpack.c.b16 %v184, %v182
    %v203 = vpack.c.b16 %v187, %v185
    %v204 = vpack.c.b16 %v188, %v186
    %221 = vmatprep.subr.bf16.mxu0 %v190
    %222 = vmatpush1.bf16.msra.mxu0 %v189
    %223 = vmatprep.subr.bf16.mxu0 %v192
    %224 = vmatpush1.bf16.msra.mxu0 %v191
    %225 = vmatprep.subr.bf16.mxu0 %v194
    %226 = vmatpush1.bf16.msra.mxu0 %v193
    %227 = vmatprep.subr.bf16.mxu0 %v196
    %228 = vmatpush1.bf16.msra.mxu0 %v195
    %229 = vmatprep.subr.bf16.mxu0 %v198
    %230 = vmatpush1.bf16.msra.mxu0 %v197
    %231 = vmatprep.subr.bf16.mxu0 %v200
    %232 = vmatpush1.bf16.msra.mxu0 %v199
    %233 = vmatprep.subr.bf16.mxu0 %v202
    %234 = vmatpush1.bf16.msra.mxu0 %v201
    %235 = vmatprep.subr.bf16.mxu0 %v204
    %236 = vmatpush1.bf16.msra.mxu0 %v203
    %237 = vmatprep.subr.bf16.mxu0 0
    %238 = vmatpush1.bf16.msra.mxu0 0
    %239 = vmatprep.subr.bf16.mxu0 0
    %240 = vmatpush1.bf16.msra.mxu0 0
    %241 = vmatprep.subr.bf16.mxu0 0
    %242 = vmatpush1.bf16.msra.mxu0 0
    %243 = vmatprep.subr.bf16.mxu0 0
    %244 = vmatpush1.bf16.msra.mxu0 0
    %245 = vmatprep.subr.bf16.mxu0 0
    %246 = vmatpush1.bf16.msra.mxu0 0
    %247 = vmatprep.subr.bf16.mxu0 0
    %248 = vmatpush1.bf16.msra.mxu0 0
    %249 = vmatprep.subr.bf16.mxu0 0
    %250 = vmatpush1.bf16.msra.mxu0 0
    %251 = vmatprep.subr.bf16.mxu0 0
    %252 = vmatpush1.bf16.msra.mxu0 0
    %253 = vmatprep.mubr.bf16.mxu0 0
    %254 = vmatmul.mubr.bf16.gmra.mrb[0].mxu0 %v112
    %v255 = vpop.f32.mrb[0].mxu0
    %v256 = vadd.f32 %v134, %v255
    %v257 = vpop.f32.mrb[0].mxu0
    %v258 = vadd.f32 %v138, %v257
    %v259 = vpop.f32.mrb[0].mxu0
    %v260 = vadd.f32 %v134, %v259
    %v261 = vpop.f32.mrb[0].mxu0
    %v262 = vadd.f32 %v138, %v261
    %263 = vdwg.mxu0
    %v264 = vmul.f32 %v256, 0.5
    %v265 = vmul.f32 %v258, 0.5
    %v266 = vmul.f32 %v260, 0.5
    %v267 = vmul.f32 %v262, 0.5
    %v268 = vmul.f32 %v256, 0.70710677
    %v269 = vmul.f32 %v258, 0.70710677
    %v270 = vmul.f32 %v260, 0.70710677
    %v271 = vmul.f32 %v262, 0.70710677
    %v272 = vand.u32 2147483647, %v268
    %v273 = vand.u32 2147483647, %v269
    %v274 = vand.u32 2147483647, %v270
    %v275 = vand.u32 2147483647, %v271
    %v276 = vmul.f32 %v272, 0.3275911
    %v277 = vmul.f32 %v273, 0.3275911
    %v278 = vmul.f32 %v274, 0.3275911
    %v279 = vmul.f32 %v275, 0.3275911
    %v280 = vadd.f32 %v276, 1.0
    %v281 = vadd.f32 %v277, 1.0
    %v282 = vadd.f32 %v278, 1.0
    %v283 = vadd.f32 %v279, 1.0
    %v284 = vrcp.pop %v280
    %v285 = vrcp.pop %v281
    %v286 = vrcp.pop %v282
    %v287 = vrcp.pop %v283
    %v288 = vmul.f32 %v284, 1.0614054
    %v289 = vmul.f32 %v285, 1.0614054
    %v290 = vmul.f32 %v286, 1.0614054
    %v291 = vmul.f32 %v287, 1.0614054
    %v292 = vadd.f32 %v288, -1.4531521
    %v293 = vadd.f32 %v289, -1.4531521
    %v294 = vadd.f32 %v290, -1.4531521
    %v295 = vadd.f32 %v291, -1.4531521
    %v296 = vmul.f32 %v292, %v284
    %v297 = vmul.f32 %v293, %v285
    %v298 = vmul.f32 %v294, %v286
    %v299 = vmul.f32 %v295, %v287
    %v300 = vadd.f32 %v296, 1.4214138
    %v301 = vadd.f32 %v297, 1.4214138
    %v302 = vadd.f32 %v298, 1.4214138
    %v303 = vadd.f32 %v299, 1.4214138
    %v304 = vmul.f32 %v300, %v284
    %v305 = vmul.f32 %v301, %v285
    %v306 = vmul.f32 %v302, %v286
    %v307 = vmul.f32 %v303, %v287
    %v308 = vadd.f32 %v304, -0.28449672
    %v309 = vadd.f32 %v305, -0.28449672
    %v310 = vadd.f32 %v306, -0.28449672
    %v311 = vadd.f32 %v307, -0.28449672
    %v312 = vmul.f32 %v308, %v284
    %v313 = vmul.f32 %v309, %v285
    %v314 = vmul.f32 %v310, %v286
    %v315 = vmul.f32 %v311, %v287
    %v316 = vadd.f32 %v312, 0.2548296
    %v317 = vadd.f32 %v313, 0.2548296
    %v318 = vadd.f32 %v314, 0.2548296
    %v319 = vadd.f32 %v315, 0.2548296
    %v320 = vmul.f32 %v316, %v284
    %v321 = vmul.f32 %v317, %v285
    %v322 = vmul.f32 %v318, %v286
    %v323 = vmul.f32 %v319, %v287
    %v324 = vsub.f32 0.0, %v272
    %v325 = vsub.f32 0.0, %v273
    %v326 = vsub.f32 0.0, %v274
    %v327 = vsub.f32 0.0, %v275
    %v328 = vmul.f32 %v324, %v272
    %v329 = vmul.f32 %v325, %v273
    %v330 = vmul.f32 %v326, %v274
    %v331 = vmul.f32 %v327, %v275
    %v332 = vmul.f32 %v328, 1.442695
    %v333 = vpow.pop %v332
    %v334 = vmul.f32 %v329, 1.442695
    %v335 = vpow.pop %v334
    %v336 = vmul.f32 %v330, 1.442695
    %v337 = vpow.pop %v336
    %v338 = vmul.f32 %v331, 1.442695
    %v339 = vpow.pop %v338
    %v340 = vmul.f32 %v320, %v333
    %v341 = vmul.f32 %v321, %v335
    %v342 = vmul.f32 %v322, %v337
    %v343 = vmul.f32 %v323, %v339
    %v344 = vsub.f32 1.0, %v340
    %v345 = vsub.f32 1.0, %v341
    %v346 = vsub.f32 1.0, %v342
    %v347 = vsub.f32 1.0, %v343
    %vm348 = vcmp.ge.f32.partialorder %v268, 0.0
    %vm349 = vcmp.ge.f32.partialorder %v269, 0.0
    %vm350 = vcmp.ge.f32.partialorder %v270, 0.0
    %vm351 = vcmp.ge.f32.partialorder %v271, 0.0
    %v352 = vsub.f32 0.0, %v344
    %v353 = vsub.f32 0.0, %v345
    %v354 = vsub.f32 0.0, %v346
    %v355 = vsub.f32 0.0, %v347
    %v356 = vsel %vm348, %v344, %v352
    %v357 = vsel %vm349, %v345, %v353
    %v358 = vsel %vm350, %v346, %v354
    %v359 = vsel %vm351, %v347, %v355
    %v360 = vadd.f32 %v356, 1.0
    %v361 = vadd.f32 %v357, 1.0
    %v362 = vadd.f32 %v358, 1.0
    %v363 = vadd.f32 %v359, 1.0
    %v364 = vmul.f32 %v264, %v360
    %v365 = vmul.f32 %v265, %v361
    %v366 = vmul.f32 %v266, %v362
    %v367 = vmul.f32 %v267, %v363
    %v368 = vpack.c.bf16 %v366, %v364
    %v369 = vpack.c.bf16 %v367, %v365
    %v370 = vld [vmem:[#allocation7] sm:$0xf]
    %v371 = vld [vmem:[#allocation7 + $0x4] sm:$0xf]
    %v372 = vld [vmem:[#allocation7 + $0x8] sm:$0xf]
    %v373 = vld [vmem:[#allocation7 + $0xc] sm:$0xf]
    %v374 = vld [vmem:[#allocation7 + $0x10] sm:$0xf]
    %v375 = vld [vmem:[#allocation7 + $0x14] sm:$0xf]
    %v376 = vld [vmem:[#allocation7 + $0x18] sm:$0xf]
    %v377 = vld [vmem:[#allocation7 + $0x1c] sm:$0xf]
    %v378 = vld [vmem:[#allocation7 + $0x20] sm:$0xf]
    %v379 = vld [vmem:[#allocation7 + $0x24] sm:$0xf]
    %v380 = vld [vmem:[#allocation7 + $0x28] sm:$0xf]
    %v381 = vld [vmem:[#allocation7 + $0x2c] sm:$0xf]
    %v382 = vld [vmem:[#allocation7 + $0x30] sm:$0xf]
    %v383 = vld [vmem:[#allocation7 + $0x34] sm:$0xf]
    %v384 = vld [vmem:[#allocation7 + $0x38] sm:$0xf]
    %v385 = vld [vmem:[#allocation7 + $0x3c] sm:$0xf]
    %v386 = vld [vmem:[#allocation7 + $0x40] sm:$0xf]
    %v387 = vld [vmem:[#allocation7 + $0x44] sm:$0xf]
    %v388 = vld [vmem:[#allocation7 + $0x48] sm:$0xf]
    %v389 = vld [vmem:[#allocation7 + $0x4c] sm:$0xf]
    %v390 = vld [vmem:[#allocation7 + $0x50] sm:$0xf]
    %v391 = vld [vmem:[#allocation7 + $0x54] sm:$0xf]
    %v392 = vld [vmem:[#allocation7 + $0x58] sm:$0xf]
    %v393 = vld [vmem:[#allocation7 + $0x5c] sm:$0xf]
    %v394 = vld [vmem:[#allocation7 + $0x60] sm:$0xf]
    %v395 = vld [vmem:[#allocation7 + $0x64] sm:$0xf]
    %v396 = vld [vmem:[#allocation7 + $0x68] sm:$0xf]
    %v397 = vld [vmem:[#allocation7 + $0x6c] sm:$0xf]
    %v398 = vld [vmem:[#allocation7 + $0x70] sm:$0xf]
    %v399 = vld [vmem:[#allocation7 + $0x74] sm:$0xf]
    %v400 = vld [vmem:[#allocation7 + $0x78] sm:$0xf]
    %v401 = vld [vmem:[#allocation7 + $0x7c] sm:$0xf]
    %v402 = vld [vmem:[%s6] sm:$0x1]
    %v404 = vlaneseq
    %v405 = vshrl.u32 %v404, 7
    %v406 = vsub.s32 0, %v405
    %v407 = vrot.slane %v402, %v406
    %v441 = vunpack.c.l.b16 %v370
    %v442 = vunpack.c.l.b16 %v371
    %v443 = vunpack.c.l.b16 %v372
    %v444 = vunpack.c.l.b16 %v373
    %v445 = vunpack.c.l.b16 %v374
    %v446 = vunpack.c.l.b16 %v375
    %v447 = vunpack.c.l.b16 %v376
    %v448 = vunpack.c.l.b16 %v377
    %v449 = vunpack.c.l.b16 %v378
    %v450 = vunpack.c.l.b16 %v379
    %v451 = vunpack.c.l.b16 %v380
    %v452 = vunpack.c.l.b16 %v381
    %v453 = vunpack.c.l.b16 %v382
    %v454 = vunpack.c.l.b16 %v383
    %v455 = vunpack.c.l.b16 %v384
    %v456 = vunpack.c.l.b16 %v385
    %v457 = vunpack.c.l.b16 %v386
    %v458 = vunpack.c.l.b16 %v387
    %v459 = vunpack.c.l.b16 %v388
    %v460 = vunpack.c.l.b16 %v389
    %v461 = vunpack.c.l.b16 %v390
    %v462 = vunpack.c.l.b16 %v391
    %v463 = vunpack.c.l.b16 %v392
    %v464 = vunpack.c.l.b16 %v393
    %v465 = vunpack.c.l.b16 %v394
    %v466 = vunpack.c.l.b16 %v395
    %v467 = vunpack.c.l.b16 %v396
    %v468 = vunpack.c.l.b16 %v397
    %v469 = vunpack.c.l.b16 %v398
    %v470 = vunpack.c.l.b16 %v399
    %v471 = vunpack.c.l.b16 %v400
    %v472 = vunpack.c.l.b16 %v401
    %v473 = vpack.c.b16 %v442, %v441
    %v474 = vpack.c.b16 %v444, %v443
    %v475 = vpack.c.b16 %v446, %v445
    %v476 = vpack.c.b16 %v448, %v447
    %v477 = vpack.c.b16 %v450, %v449
    %v478 = vpack.c.b16 %v452, %v451
    %v479 = vpack.c.b16 %v454, %v453
    %v480 = vpack.c.b16 %v456, %v455
    %v481 = vpack.c.b16 %v458, %v457
    %v482 = vpack.c.b16 %v460, %v459
    %v483 = vpack.c.b16 %v462, %v461
    %v484 = vpack.c.b16 %v464, %v463
    %v485 = vpack.c.b16 %v466, %v465
    %v486 = vpack.c.b16 %v468, %v467
    %v487 = vpack.c.b16 %v470, %v469
    %v488 = vpack.c.b16 %v472, %v471
    %505 = vmatprep.subr.bf16.mxu0 0
    %506 = vmatpush1.bf16.msra.mxu0 %v473
    %507 = vmatprep.subr.bf16.mxu0 0
    %508 = vmatpush1.bf16.msra.mxu0 %v474
    %509 = vmatprep.subr.bf16.mxu0 0
    %510 = vmatpush1.bf16.msra.mxu0 %v475
    %511 = vmatprep.subr.bf16.mxu0 0
    %512 = vmatpush1.bf16.msra.mxu0 %v476
    %513 = vmatprep.subr.bf16.mxu0 0
    %514 = vmatpush1.bf16.msra.mxu0 %v477
    %515 = vmatprep.subr.bf16.mxu0 0
    %516 = vmatpush1.bf16.msra.mxu0 %v478
    %517 = vmatprep.subr.bf16.mxu0 0
    %518 = vmatpush1.bf16.msra.mxu0 %v479
    %519 = vmatprep.subr.bf16.mxu0 0
    %520 = vmatpush1.bf16.msra.mxu0 %v480
    %521 = vmatprep.subr.bf16.mxu0 0
    %522 = vmatpush1.bf16.msra.mxu0 %v481
    %523 = vmatprep.subr.bf16.mxu0 0
    %524 = vmatpush1.bf16.msra.mxu0 %v482
    %525 = vmatprep.subr.bf16.mxu0 0
    %526 = vmatpush1.bf16.msra.mxu0 %v483
    %527 = vmatprep.subr.bf16.mxu0 0
    %528 = vmatpush1.bf16.msra.mxu0 %v484
    %529 = vmatprep.subr.bf16.mxu0 0
    %530 = vmatpush1.bf16.msra.mxu0 %v485
    %531 = vmatprep.subr.bf16.mxu0 0
    %532 = vmatpush1.bf16.msra.mxu0 %v486
    %533 = vmatprep.subr.bf16.mxu0 0
    %534 = vmatpush1.bf16.msra.mxu0 %v487
    %535 = vmatprep.subr.bf16.mxu0 0
    %536 = vmatpush1.bf16.msra.mxu0 %v488
    %537 = vmatprep.mubr.bf16.mxu0 %v369
    %538 = vmatmul.mubr.bf16.gmra.mrb[0].mxu0 %v368
    %v539 = vpop.f32.mrb[0].mxu0
    %v540 = vadd.f32 %v407, %v539
    %v541 = vpop.f32.mrb[0].mxu0
    %v542 = vpop.f32.mrb[0].mxu0
    %v543 = vadd.f32 %v407, %v542
    %v544 = vpop.f32.mrb[0].mxu0
    %545 = vdwg.mxu0
    %546 = vst [vmem:[#allocation8] sm:$0xff] %v540
    %547 = vst [vmem:[#allocation8 + $0x8] sm:$0xff] %v543
    // Predicated region
    $region42: #{tpu_custom_call.1} parent=1 // pred_check
      _
    $region43: #{tpu_custom_call.1} parent=1 // pred_check_branch
      %549 = sbr.rel (0) target = $region45
    $region44: #{tpu_custom_call.1} parent=1 // pred_region
      %s551 = ssub.s32 256, 256
      %552 = vsyncadd [#allocation4], %s551
      %s553 = sshll.u32 [#allocation8], 4
      %s554 = int_to_ptr.vmem [resolvable:$true] %s553
      %559 = dma.vmem_to_hbm [thread:$0]  %s554, 256, %s7, [#allocation4], 128, 128, 8
    $region45: #{tpu_custom_call.1} parent=1 // pred_fallthru
      _
    // Predicated region
    $region46: #{tpu_custom_call.1} parent=1 // pred_check
      _
    $region47: #{tpu_custom_call.1} parent=1 // pred_check_branch
      %561 = sbr.rel (0) target = $region49
    $region48: #{tpu_custom_call.1} parent=1 // pred_region
      %562 = dma.done [#allocation4], 256
    $region49: #{tpu_custom_call.1} parent=1 // pred_fallthru
      _
    %563 = vsyncpa [#allocation3], 1
    %564 = vsyncpa [#allocation6], 1
    %565 = vsyncpa [#allocation4], 1

</llo_original>
